<compile_context>
chip_gen: v7x
topology: tpu7x:2x2x1
jax: 0.10.0
libtpu: 0.0.40
codegen_flags: <defaults>
</compile_context>

<pallas_src>
import functools

import numpy as np
import jax
import jax.numpy as jnp
from jax import lax
from jax.experimental import pallas as pl
from jax.experimental.pallas import tpu as pltpu


# --------------------------------------------------------------------------
# helpers
# --------------------------------------------------------------------------
def _sublane(itemsize):
    """Sublane packing of the storage dtype: 8 rows for f32, 16 for bf16."""
    return 8 * (4 // itemsize)


def _vmem_capacity_bytes():
    try:
        return int(pltpu.get_tpu_info().vmem_capacity_bytes)
    except Exception:
        return 64 * 1024 * 1024          # v7x-safe fallback


def _pick_tile_h(H, W, itemsize, pad, target_plane_bytes):
    """Largest H tile (divisor of H, multiple of 32, >= pad) within budget."""
    if H * W * itemsize <= target_plane_bytes:
        return H
    cap = max(32, (target_plane_bytes // (W * itemsize)) // 32 * 32)
    for t in range(min(cap, H), 31, -32):
        if H % t == 0 and t >= pad:
            return t
    return H     # no suitable divisor -> fall back to one full-height tile


def _pick_bn(N, H, W, itemsize, target_block_bytes):
    """Batch elements per block for the single-tile path (divisor of N)."""
    per = 2 * H * W * itemsize
    best = 1
    for bn in range(1, N + 1):
        if N % bn == 0 and bn * per <= max(per, target_block_bytes):
            best = bn
    return best


# --------------------------------------------------------------------------
# kernels
# --------------------------------------------------------------------------
def _rule_kernel_single(x_ref, mask_ref, o_ref, *, hk_max, radius, bn):
    """Whole lattice height in VMEM: vertical wrap via sublane rolls.

    x_ref/o_ref: (bn, 2, H, W) storage dtype; mask_ref: (H, W) int8 (resident).
    """
    R = radius
    H, W = mask_ref.shape
    drop = mask_ref[...] != 0                       # load mask once per block
    for b in range(bn):                             # static unroll over batch
        s = x_ref[b, 0]
        mom = x_ref[b, 1]
        Js = jnp.zeros_like(s)
        for d in range(1, R + 1):
            Js = Js + pltpu.roll(s, d, axis=1) + pltpu.roll(s, W - d, axis=1)
            Js = Js + pltpu.roll(s, d, axis=0) + pltpu.roll(s, H - d, axis=0)
        hk_new = mom - 2.0 * s * Js                 # exact small integers
        conserve = jnp.logical_and(hk_new >= 0.0, hk_new <= hk_max)
        flip = jnp.logical_and(conserve, drop)
        o_ref[b, 0] = jnp.where(flip, -s, s)
        o_ref[b, 1] = jnp.where(flip, hk_new, mom)


def _rule_kernel_tiled(xc_ref, x_hbm, mask_ref, o_ref, halo_ref, sem, *,
                       hk_max, radius, pad, lattice_h):
    """One (H-tile, batch) step; circular vertical wrap via halo DMAs.

    xc_ref/o_ref: (2, tile_h, W); x_hbm: raw (N, 2, H, W) HBM ref;
    mask_ref: (tile_h, W) int8; halo_ref: (tile_h + 2*pad, W) VMEM scratch.
    """
    R, PAD, H = radius, pad, lattice_h
    tile_h, W = mask_ref.shape
    i = pl.program_id(0)           # H-tile index (outer)
    n = pl.program_id(1)           # batch index (inner; mask stays resident)
    row0 = i * tile_h

    # Kick off the two tiny wrap-row DMAs first (each span is contiguous in
    # HBM because tile_h >= PAD and destinations are sublane aligned).
    top_start = (row0 - PAD + H) % H
    bot_start = (row0 + tile_h) % H
    top_cp = pltpu.make_async_copy(
        x_hbm.at[n, 0, pl.ds(top_start, PAD), :],
        halo_ref.at[pl.ds(0, PAD), :], sem.at[0])
    bot_cp = pltpu.make_async_copy(
        x_hbm.at[n, 0, pl.ds(bot_start, PAD), :],
        halo_ref.at[pl.ds(PAD + tile_h, PAD), :], sem.at[1])
    top_cp.start()
    bot_cp.start()

    s = xc_ref[0]                  # (tile_h, W) spin slab
    mom = xc_ref[1]                # (tile_h, W) momentum slab

    # Center copy + horizontal lane rolls overlap the in-flight halo DMAs
    # (DMA destinations are disjoint from the center rows).
    halo_ref[PAD:PAD + tile_h, :] = s

    Js = jnp.zeros_like(s)
    for d in range(1, R + 1):      # block spans full W -> roll wrap == lattice wrap
        Js = Js + pltpu.roll(s, d, axis=1) + pltpu.roll(s, W - d, axis=1)

    top_cp.wait()
    bot_cp.wait()
    for d in range(1, R + 1):      # vertical neighbours: static offset loads
        Js = Js + halo_ref[PAD - d:PAD - d + tile_h, :]
        Js = Js + halo_ref[PAD + d:PAD + d + tile_h, :]

    hk_new = mom - 2.0 * s * Js
    conserve = jnp.logical_and(hk_new >= 0.0, hk_new <= hk_max)
    flip = jnp.logical_and(conserve, mask_ref[...] != 0)
    o_ref[0] = jnp.where(flip, -s, s)
    o_ref[1] = jnp.where(flip, hk_new, mom)


# --------------------------------------------------------------------------
# wrapper
# --------------------------------------------------------------------------
def rule_forward(x, u, *, hk_max, radius=2, tile_h=None):
    """Pallas implementation of Rule.forward.  x: (N, 2, H, W), u: (H, W)."""
    N, C, H, W = x.shape
    assert C == 2, "expected 2 channels (spin, momentum)"
    assert u.shape == (H, W)
    dtype = x.dtype
    itemsize = jnp.dtype(dtype).itemsize
    assert itemsize in (2, 4), "supported storage dtypes: float32 / bfloat16"
    if itemsize == 2:
        # bf16 is bit-exact only while all values stay small integers.
        assert float(hk_max) + 4 * radius < 256, "bf16 storage not exact here"
    R = radius
    sub = _sublane(itemsize)
    PAD = ((R + sub - 1) // sub) * sub

    # Dropout mask as int8 (1 B/elem HBM read instead of a 4 B uniform field).
    mask = (u > 0.75).astype(jnp.int8)

    vmem_cap = _vmem_capacity_bytes()
    plane_target = (4 << 20) if vmem_cap >= (96 << 20) else (2 << 20)
    vmem_limit = min(int(vmem_cap * 3 // 4), 100 << 20)

    if tile_h is None:
        tile_h = _pick_tile_h(H, W, itemsize, PAD, plane_target)

    if tile_h >= H:
        # ---- single-tile fast path: whole H in VMEM, no halo DMAs ----------
        bn = _pick_bn(N, H, W, itemsize, 2 * plane_target)
        kernel = functools.partial(_rule_kernel_single, hk_max=float(hk_max),
                                   radius=R, bn=bn)
        return pl.pallas_call(
            kernel,
            out_shape=jax.ShapeDtypeStruct((N, 2, H, W), dtype),
            grid=(N // bn,),
            in_specs=[
                pl.BlockSpec((bn, 2, H, W), lambda g: (g, 0, 0, 0)),
                pl.BlockSpec((H, W), lambda g: (0, 0)),     # resident mask
            ],
            out_specs=pl.BlockSpec((bn, 2, H, W), lambda g: (g, 0, 0, 0)),
            compiler_params=pltpu.CompilerParams(
                dimension_semantics=("parallel",),
                vmem_limit_bytes=vmem_limit),
        )(x, mask)

    # ---- tiled path: circular wrap across H-tile boundaries via halo DMAs --
    assert H % tile_h == 0, "tile_h must divide H"
    assert tile_h % 32 == 0, "H tile must be 32-row aligned (f32/bf16/int8)"
    assert tile_h >= PAD, "tile_h must be >= sublane-padded radius (halo DMAs)"
    # NOTE: horizontal wrap correctness relies on the block spanning full W.
    n_h = H // tile_h
    kernel = functools.partial(_rule_kernel_tiled, hk_max=float(hk_max),
                               radius=R, pad=PAD, lattice_h=H)
    return pl.pallas_call(
        kernel,
        out_shape=jax.ShapeDtypeStruct((N, 2, H, W), dtype),
        grid=(n_h, N),                      # batch innermost -> mask resident
        in_specs=[
            # both channels of the current H-tile, auto-pipelined
            pl.BlockSpec((pl.Squeezed(), 2, tile_h, W),
                         lambda i, n: (n, 0, i, 0)),
            # same array again as a raw HBM ref for the circular halo DMAs
            pl.BlockSpec(memory_space=pl.ANY),
            # int8 dropout mask tile (constant along the inner batch axis)
            pl.BlockSpec((tile_h, W), lambda i, n: (i, 0)),
        ],
        out_specs=pl.BlockSpec((pl.Squeezed(), 2, tile_h, W),
                               lambda i, n: (n, 0, i, 0)),
        scratch_shapes=[
            pltpu.VMEM((tile_h + 2 * PAD, W), dtype),       # halo'd spin buffer
            pltpu.SemaphoreType.DMA((2,)),
        ],
        compiler_params=pltpu.CompilerParams(
            dimension_semantics=("parallel", "parallel"),
            vmem_limit_bytes=vmem_limit),
    )(x, x, mask)


# --------------------------------------------------------------------------
# pure-JAX reference (mirrors the PyTorch module with an explicit conv2d)
# --------------------------------------------------------------------------
def rule_reference(x, u, *, hk_max, radius=2):
    R = radius
    Rk = 2 * R + 1
    k = np.zeros((1, 1, Rk, Rk), np.float32)   # cross-shaped neighbour kernel
    k[:, :, R, :] = 1.0
    k[:, :, :, R] = 1.0
    k[:, :, R, R] = 0.0
    k = jnp.asarray(k)

    s = x[:, 0:1]
    momentum = x[:, 1:2]
    s_pad = jnp.pad(s, ((0, 0), (0, 0), (R, R), (R, R)), mode="wrap")
    Js = lax.conv_general_dilated(
        s_pad, k, window_strides=(1, 1), padding="VALID",
        dimension_numbers=("NCHW", "OIHW", "NCHW"))
    delta_e = 2.0 * s * Js
    hk_new = momentum - delta_e
    conserve = jnp.logical_and(hk_new >= 0.0, hk_new <= hk_max)
    dropout = (u > 0.75)[None, None]
    flip = jnp.logical_and(conserve, dropout)
    s_new = jnp.where(flip, -s, s)
    mom_new = jnp.where(flip, hk_new, momentum)
    return jnp.concatenate([s_new, mom_new], axis=1)


# --------------------------------------------------------------------------
if __name__ == "__main__":
    HK_MAX = 8.0
    RADIUS = 2

    def make_inputs(key, N, H, W, dtype=jnp.float32):
        k_spin, k_mom, k_u = jax.random.split(key, 3)
        spins = jnp.where(
            jax.random.bernoulli(k_spin, 0.5, (N, 1, H, W)), 1.0, -1.0
        ).astype(jnp.float32)
        momentum = jax.random.randint(
            k_mom, (N, 1, H, W), 0, int(HK_MAX) + 1).astype(jnp.float32)
        x = jnp.concatenate([spins, momentum], axis=1).astype(dtype)
        u = jax.random.uniform(k_u, (H, W), dtype=jnp.float32)
        return x, u

    k1, k2 = jax.random.split(jax.random.PRNGKey(0))

    # 1) small f32 lattice -> single-tile, batch-folded fast path
    x, u = make_inputs(k1, N=2, H=16, W=128)
    out = jax.block_until_ready(rule_forward(x, u, hk_max=HK_MAX, radius=RADIUS))
    ref = rule_reference(x, u, hk_max=HK_MAX, radius=RADIUS)
    np.testing.assert_allclose(np.asarray(out), np.asarray(ref),
                               rtol=1e-6, atol=1e-6)
    assert out.shape == x.shape and out.dtype == x.dtype

    # 2) bf16 lattice with forced H tiling -> halo-DMA path (values are small
    #    integers so bf16 storage is bit-exact vs. the f32 reference)
    x2, u2 = make_inputs(k2, N=2, H=256, W=256, dtype=jnp.bfloat16)
    out2 = jax.block_until_ready(
        rule_forward(x2, u2, hk_max=HK_MAX, radius=RADIUS, tile_h=64))
    ref2 = rule_reference(x2.astype(jnp.float32), u2,
                          hk_max=HK_MAX, radius=RADIUS)
    np.testing.assert_allclose(np.asarray(out2.astype(jnp.float32)),
                               np.asarray(ref2), rtol=1e-6, atol=1e-6)
    assert out2.dtype == jnp.bfloat16

    print("KERNEL_OK")
</pallas_src>

<mosaic_0001>
module attributes {stable_mosaic.version = 11 : i64} {
  func.func @_rule_kernel_single(%arg0: i32, %arg1: memref<2x2x16x128xf32, #tpu.memory_space<vmem>>, %arg2: memref<16x128xi8, #tpu.memory_space<vmem>>, %arg3: memref<2x2x16x128xf32, #tpu.memory_space<vmem>>) attributes {dimension_semantics = [#tpu.dimension_semantics<parallel>], iteration_bounds = array<i64: 1>, scalar_prefetch = 0 : i64, scratch_operands = 0 : i64, tpu.core_type = #tpu.core_type<tc>, window_params = [{transform_indices = @transform_0, window_bounds = array<i64: 2, 2, 16, 128>}, {pipeline_mode = #tpu.pipeline_mode<synchronous>, transform_indices = @transform_1, window_bounds = array<i64: 16, 128>}, {transform_indices = @transform_2, window_bounds = array<i64: 2, 2, 16, 128>}]} {
    %c0 = arith.constant 0 : index
    %c0_0 = arith.constant 0 : index
    %0 = vector.load %arg2[%c0, %c0_0] : memref<16x128xi8, #tpu.memory_space<vmem>>, vector<16x128xi8>
    %c0_i8 = arith.constant 0 : i8
    %1 = vector.broadcast %c0_i8 : i8 to vector<16x128xi8>
    %2 = arith.cmpi ne, %0, %1 : vector<16x128xi8>
    %c0_1 = arith.constant 0 : index
    %c0_2 = arith.constant 0 : index
    %c0_3 = arith.constant 0 : index
    %c0_4 = arith.constant 0 : index
    %3 = vector.load %arg1[%c0_1, %c0_2, %c0_3, %c0_4] : memref<2x2x16x128xf32, #tpu.memory_space<vmem>>, vector<1x1x16x128xf32>
    %4 = vector.shape_cast %3 : vector<1x1x16x128xf32> to vector<16x128xf32>
    %c0_5 = arith.constant 0 : index
    %c1 = arith.constant 1 : index
    %c0_6 = arith.constant 0 : index
    %c0_7 = arith.constant 0 : index
    %5 = vector.load %arg1[%c0_5, %c1, %c0_6, %c0_7] : memref<2x2x16x128xf32, #tpu.memory_space<vmem>>, vector<1x1x16x128xf32>
    %6 = vector.shape_cast %5 : vector<1x1x16x128xf32> to vector<16x128xf32>
    %cst = arith.constant 0.000000e+00 : f32
    %7 = vector.broadcast %cst : f32 to vector<16x128xf32>
    %c1_i32 = arith.constant 1 : i32
    %8 = tpu.dynamic_rotate %4 by %c1_i32 dim 1 : vector<16x128xf32>, i32 -> vector<16x128xf32>
    %9 = arith.addf %7, %8 : vector<16x128xf32>
    %c127_i32 = arith.constant 127 : i32
    %10 = tpu.dynamic_rotate %4 by %c127_i32 dim 1 : vector<16x128xf32>, i32 -> vector<16x128xf32>
    %11 = arith.addf %9, %10 : vector<16x128xf32>
    %c1_i32_8 = arith.constant 1 : i32
    %12 = tpu.dynamic_rotate %4 by %c1_i32_8 dim 0 : vector<16x128xf32>, i32 -> vector<16x128xf32>
    %13 = arith.addf %11, %12 : vector<16x128xf32>
    %c15_i32 = arith.constant 15 : i32
    %14 = tpu.dynamic_rotate %4 by %c15_i32 dim 0 : vector<16x128xf32>, i32 -> vector<16x128xf32>
    %15 = arith.addf %13, %14 : vector<16x128xf32>
    %c2_i32 = arith.constant 2 : i32
    %16 = tpu.dynamic_rotate %4 by %c2_i32 dim 1 : vector<16x128xf32>, i32 -> vector<16x128xf32>
    %17 = arith.addf %15, %16 : vector<16x128xf32>
    %c126_i32 = arith.constant 126 : i32
    %18 = tpu.dynamic_rotate %4 by %c126_i32 dim 1 : vector<16x128xf32>, i32 -> vector<16x128xf32>
    %19 = arith.addf %17, %18 : vector<16x128xf32>
    %c2_i32_9 = arith.constant 2 : i32
    %20 = tpu.dynamic_rotate %4 by %c2_i32_9 dim 0 : vector<16x128xf32>, i32 -> vector<16x128xf32>
    %21 = arith.addf %19, %20 : vector<16x128xf32>
    %c14_i32 = arith.constant 14 : i32
    %22 = tpu.dynamic_rotate %4 by %c14_i32 dim 0 : vector<16x128xf32>, i32 -> vector<16x128xf32>
    %23 = arith.addf %21, %22 : vector<16x128xf32>
    %cst_10 = arith.constant 2.000000e+00 : f32
    %24 = vector.broadcast %cst_10 : f32 to vector<16x128xf32>
    %25 = arith.mulf %24, %4 : vector<16x128xf32>
    %26 = arith.mulf %25, %23 : vector<16x128xf32>
    %27 = arith.subf %6, %26 : vector<16x128xf32>
    %cst_11 = arith.constant 0.000000e+00 : f32
    %28 = vector.broadcast %cst_11 : f32 to vector<16x128xf32>
    %29 = arith.cmpf oge, %27, %28 : vector<16x128xf32>
    %cst_12 = arith.constant 8.000000e+00 : f32
    %30 = vector.broadcast %cst_12 : f32 to vector<16x128xf32>
    %31 = arith.cmpf ole, %27, %30 : vector<16x128xf32>
    %32 = arith.andi %29, %31 : vector<16x128xi1>
    %33 = arith.andi %32, %2 : vector<16x128xi1>
    %cst_13 = arith.constant 0.000000e+00 : f32
    %34 = vector.broadcast %cst_13 : f32 to vector<16x128xf32>
    %35 = arith.subf %34, %4 : vector<16x128xf32>
    %36 = arith.select %33, %35, %4 : vector<16x128xi1>, vector<16x128xf32>
    %c0_14 = arith.constant 0 : index
    %c0_15 = arith.constant 0 : index
    %c0_16 = arith.constant 0 : index
    %c0_17 = arith.constant 0 : index
    %37 = vector.load %arg3[%c0_14, %c0_15, %c0_16, %c0_17] : memref<2x2x16x128xf32, #tpu.memory_space<vmem>>, vector<1x1x16x128xf32>
    %38 = vector.shape_cast %37 : vector<1x1x16x128xf32> to vector<16x128xf32>
    %39 = vector.shape_cast %36 : vector<16x128xf32> to vector<1x1x16x128xf32>
    tpu.vector_store %arg3[%c0_14, %c0_15, %c0_16, %c0_17], %39 {strides = array<i32>} : memref<2x2x16x128xf32, #tpu.memory_space<vmem>>, vector<1x1x16x128xf32>,
    %40 = arith.select %33, %27, %6 : vector<16x128xi1>, vector<16x128xf32>
    %c0_18 = arith.constant 0 : index
    %c1_19 = arith.constant 1 : index
    %c0_20 = arith.constant 0 : index
    %c0_21 = arith.constant 0 : index
    %41 = vector.load %arg3[%c0_18, %c1_19, %c0_20, %c0_21] : memref<2x2x16x128xf32, #tpu.memory_space<vmem>>, vector<1x1x16x128xf32>
    %42 = vector.shape_cast %41 : vector<1x1x16x128xf32> to vector<16x128xf32>
    %43 = vector.shape_cast %40 : vector<16x128xf32> to vector<1x1x16x128xf32>
    tpu.vector_store %arg3[%c0_18, %c1_19, %c0_20, %c0_21], %43 {strides = array<i32>} : memref<2x2x16x128xf32, #tpu.memory_space<vmem>>, vector<1x1x16x128xf32>,
    %c1_22 = arith.constant 1 : index
    %c0_23 = arith.constant 0 : index
    %c0_24 = arith.constant 0 : index
    %c0_25 = arith.constant 0 : index
    %44 = vector.load %arg1[%c1_22, %c0_23, %c0_24, %c0_25] : memref<2x2x16x128xf32, #tpu.memory_space<vmem>>, vector<1x1x16x128xf32>
    %45 = vector.shape_cast %44 : vector<1x1x16x128xf32> to vector<16x128xf32>
    %c1_26 = arith.constant 1 : index
    %c1_27 = arith.constant 1 : index
    %c0_28 = arith.constant 0 : index
    %c0_29 = arith.constant 0 : index
    %46 = vector.load %arg1[%c1_26, %c1_27, %c0_28, %c0_29] : memref<2x2x16x128xf32, #tpu.memory_space<vmem>>, vector<1x1x16x128xf32>
    %47 = vector.shape_cast %46 : vector<1x1x16x128xf32> to vector<16x128xf32>
    %cst_30 = arith.constant 0.000000e+00 : f32
    %48 = vector.broadcast %cst_30 : f32 to vector<16x128xf32>
    %c1_i32_31 = arith.constant 1 : i32
    %49 = tpu.dynamic_rotate %45 by %c1_i32_31 dim 1 : vector<16x128xf32>, i32 -> vector<16x128xf32>
    %50 = arith.addf %48, %49 : vector<16x128xf32>
    %c127_i32_32 = arith.constant 127 : i32
    %51 = tpu.dynamic_rotate %45 by %c127_i32_32 dim 1 : vector<16x128xf32>, i32 -> vector<16x128xf32>
    %52 = arith.addf %50, %51 : vector<16x128xf32>
    %c1_i32_33 = arith.constant 1 : i32
    %53 = tpu.dynamic_rotate %45 by %c1_i32_33 dim 0 : vector<16x128xf32>, i32 -> vector<16x128xf32>
    %54 = arith.addf %52, %53 : vector<16x128xf32>
    %c15_i32_34 = arith.constant 15 : i32
    %55 = tpu.dynamic_rotate %45 by %c15_i32_34 dim 0 : vector<16x128xf32>, i32 -> vector<16x128xf32>
    %56 = arith.addf %54, %55 : vector<16x128xf32>
    %c2_i32_35 = arith.constant 2 : i32
    %57 = tpu.dynamic_rotate %45 by %c2_i32_35 dim 1 : vector<16x128xf32>, i32 -> vector<16x128xf32>
    %58 = arith.addf %56, %57 : vector<16x128xf32>
    %c126_i32_36 = arith.constant 126 : i32
    %59 = tpu.dynamic_rotate %45 by %c126_i32_36 dim 1 : vector<16x128xf32>, i32 -> vector<16x128xf32>
    %60 = arith.addf %58, %59 : vector<16x128xf32>
    %c2_i32_37 = arith.constant 2 : i32
    %61 = tpu.dynamic_rotate %45 by %c2_i32_37 dim 0 : vector<16x128xf32>, i32 -> vector<16x128xf32>
    %62 = arith.addf %60, %61 : vector<16x128xf32>
    %c14_i32_38 = arith.constant 14 : i32
    %63 = tpu.dynamic_rotate %45 by %c14_i32_38 dim 0 : vector<16x128xf32>, i32 -> vector<16x128xf32>
    %64 = arith.addf %62, %63 : vector<16x128xf32>
    %cst_39 = arith.constant 2.000000e+00 : f32
    %65 = vector.broadcast %cst_39 : f32 to vector<16x128xf32>
    %66 = arith.mulf %65, %45 : vector<16x128xf32>
    %67 = arith.mulf %66, %64 : vector<16x128xf32>
    %68 = arith.subf %47, %67 : vector<16x128xf32>
    %cst_40 = arith.constant 0.000000e+00 : f32
    %69 = vector.broadcast %cst_40 : f32 to vector<16x128xf32>
    %70 = arith.cmpf oge, %68, %69 : vector<16x128xf32>
    %cst_41 = arith.constant 8.000000e+00 : f32
    %71 = vector.broadcast %cst_41 : f32 to vector<16x128xf32>
    %72 = arith.cmpf ole, %68, %71 : vector<16x128xf32>
    %73 = arith.andi %70, %72 : vector<16x128xi1>
    %74 = arith.andi %73, %2 : vector<16x128xi1>
    %cst_42 = arith.constant 0.000000e+00 : f32
    %75 = vector.broadcast %cst_42 : f32 to vector<16x128xf32>
    %76 = arith.subf %75, %45 : vector<16x128xf32>
    %77 = arith.select %74, %76, %45 : vector<16x128xi1>, vector<16x128xf32>
    %c1_43 = arith.constant 1 : index
    %c0_44 = arith.constant 0 : index
    %c0_45 = arith.constant 0 : index
    %c0_46 = arith.constant 0 : index
    %78 = vector.load %arg3[%c1_43, %c0_44, %c0_45, %c0_46] : memref<2x2x16x128xf32, #tpu.memory_space<vmem>>, vector<1x1x16x128xf32>
    %79 = vector.shape_cast %78 : vector<1x1x16x128xf32> to vector<16x128xf32>
    %80 = vector.shape_cast %77 : vector<16x128xf32> to vector<1x1x16x128xf32>
    tpu.vector_store %arg3[%c1_43, %c0_44, %c0_45, %c0_46], %80 {strides = array<i32>} : memref<2x2x16x128xf32, #tpu.memory_space<vmem>>, vector<1x1x16x128xf32>,
    %81 = arith.select %74, %68, %47 : vector<16x128xi1>, vector<16x128xf32>
    %c1_47 = arith.constant 1 : index
    %c1_48 = arith.constant 1 : index
    %c0_49 = arith.constant 0 : index
    %c0_50 = arith.constant 0 : index
    %82 = vector.load %arg3[%c1_47, %c1_48, %c0_49, %c0_50] : memref<2x2x16x128xf32, #tpu.memory_space<vmem>>, vector<1x1x16x128xf32>
    %83 = vector.shape_cast %82 : vector<1x1x16x128xf32> to vector<16x128xf32>
    %84 = vector.shape_cast %81 : vector<16x128xf32> to vector<1x1x16x128xf32>
    tpu.vector_store %arg3[%c1_47, %c1_48, %c0_49, %c0_50], %84 {strides = array<i32>} : memref<2x2x16x128xf32, #tpu.memory_space<vmem>>, vector<1x1x16x128xf32>,
    return
  }
  func.func @transform_0(%arg0: i32) -> (i32, i32, i32, i32) {
    %c0_i32 = arith.constant 0 : i32
    %c0_i32_0 = arith.constant 0 : i32
    %c0_i32_1 = arith.constant 0 : i32
    %c0_i32_2 = arith.constant 0 : i32
    return %arg0, %c0_i32, %c0_i32_0, %c0_i32_1 : i32, i32, i32, i32
  }
  func.func @transform_1(%arg0: i32) -> (i32, i32) {
    %c0_i32 = arith.constant 0 : i32
    %c0_i32_0 = arith.constant 0 : i32
    %c0_i32_1 = arith.constant 0 : i32
    return %c0_i32, %c0_i32_0 : i32, i32
  }
  func.func @transform_2(%arg0: i32) -> (i32, i32, i32, i32) {
    %c0_i32 = arith.constant 0 : i32
    %c0_i32_0 = arith.constant 0 : i32
    %c0_i32_1 = arith.constant 0 : i32
    %c0_i32_2 = arith.constant 0 : i32
    return %arg0, %c0_i32, %c0_i32_0, %c0_i32_1 : i32, i32, i32, i32
  }
}

</mosaic_0001>

<llo_original>
// kernel: tpu_custom_call.1
$region0: #{tpu_custom_call.1}
  #allocation0 [shape = 'u32[]', space=smem, size = 0x4, offset = 0x4, fixed_abs, tag = 'smem constant byte address 0x4 - core index']
  #allocation1 [shape = 'u32[144,128]{1,0:T(1,128)}', space=vmem, size = 0x12000, scoped, tag = 'internal scratch']
  %s0 = inlined_call_operand.hbm [shape: f32[2,2,16,128], index: 0, kind: input, shape index: {}]
  %s1 = inlined_call_operand.hbm [shape: s8[16,128], index: 1, kind: input, shape index: {}]
  %s2 = inlined_call_operand.hbm [shape: f32[2,2,16,128], index: 2, kind: output, shape index: {}]
  %s3 = sld [smem:[#allocation0]]
  $region26: #{tpu_custom_call.1} parent=0
    _
  %s5 = ssub.s32 1, %s3
  %s6 = scalar_select 0, %s5, %s3
  $region1: #{tpu_custom_call.1} parent=0
    #allocation2 [shape = 'u8[32768]{0}', space=vmem, size = 0x8000, scoped, tag = 'input window, operand 0, single buffered']
    #allocation3 [shape = 's32[1]{0}', space=sflag, size = 0x4, scoped, tag = 'scoped memory for tpu_custom_call.1']
    #allocation4 [shape = 's32[1]{0}', space=sflag, size = 0x4, scoped, tag = 'scoped memory for tpu_custom_call.1']
    #allocation5 [shape = 'u8[2048]{0}', space=vmem, size = 0x800, scoped, tag = 'input window, operand 1, single buffered']
    #allocation6 [shape = 's32[1]{0}', space=sflag, size = 0x4, scoped, tag = 'scoped memory for tpu_custom_call.1']
    #allocation7 [shape = 'u8[32768]{0}', space=vmem, size = 0x8000, scoped, tag = 'output window, operand 0, single buffered']
    %7 = vsyncpa [#allocation3], 0
    %8 = vsyncpa [#allocation6], 0
    %9 = vsyncpa [#allocation4], 0
    // Predicated region
    $region2: #{tpu_custom_call.1} parent=1 // pred_check
      _
    $region3: #{tpu_custom_call.1} parent=1 // pred_check_branch
      %11 = sbr.rel (0) target = $region5
    $region4: #{tpu_custom_call.1} parent=1 // pred_region
      %s13 = ssub.s32 1024, 1024
      %14 = vsyncadd [#allocation3], %s13
      %s15 = sshll.u32 [#allocation2], 4
      %s16 = int_to_ptr.vmem [resolvable:$true] %s15
      %21 = dma.hbm_to_vmem [thread:$0]  %s0, 1024, %s16, [#allocation3], 128, 128, 8
    $region5: #{tpu_custom_call.1} parent=1 // pred_fallthru
      _
    // Predicated region
    $region6: #{tpu_custom_call.1} parent=1 // pred_check
      _
    $region7: #{tpu_custom_call.1} parent=1 // pred_check_branch
      %23 = sbr.rel (0) target = $region9
    $region8: #{tpu_custom_call.1} parent=1 // pred_region
      %s25 = ssub.s32 64, 64
      %26 = vsyncadd [#allocation6], %s25
      %s27 = sshll.u32 [#allocation5], 4
      %s28 = int_to_ptr.vmem [resolvable:$true] %s27
      %33 = dma.hbm_to_vmem [thread:$0]  %s1, 64, %s28, [#allocation6], 32, 32, 2
    $region9: #{tpu_custom_call.1} parent=1 // pred_fallthru
      _
    // Predicated region
    $region10: #{tpu_custom_call.1} parent=1 // pred_check
      _
    $region11: #{tpu_custom_call.1} parent=1 // pred_check_branch
      %35 = sbr.rel (0) target = $region13
    $region12: #{tpu_custom_call.1} parent=1 // pred_region
      %36 = dma.done [#allocation3], 1024
    $region13: #{tpu_custom_call.1} parent=1 // pred_fallthru
      _
    // Predicated region
    $region14: #{tpu_custom_call.1} parent=1 // pred_check
      _
    $region15: #{tpu_custom_call.1} parent=1 // pred_check_branch
      %38 = sbr.rel (0) target = $region17
    $region16: #{tpu_custom_call.1} parent=1 // pred_region
      %39 = dma.done [#allocation6], 64
    $region17: #{tpu_custom_call.1} parent=1 // pred_fallthru
      _
    %v42 = vld [vmem:[#allocation5] sm:$0x3]
    %v43 = vld [vmem:[#allocation5 + $0x2] sm:$0x3]
    %vm44 = vnez %v42
    %vm45 = vnez %v43
    %v46 = vld [vmem:[#allocation2] sm:$0xff]
    %v47 = vld [vmem:[#allocation2 + $0x8] sm:$0xff]
    %s48 = scalar_lea.vmem [#allocation2], 16
    %v49 = vld [vmem:[%s48] sm:$0xff]
    %v50 = vld [vmem:[%s48 + $0x8] sm:$0xff]
    %51 = vrot.lane.b32.xlu0 %v46, 1
    %v52 = vpop.permute.xlu0 %51
    %53 = vrot.lane.b32.xlu0 %v47, 1
    %v54 = vpop.permute.xlu0 %53
    %v55 = vadd.f32 %v52, 0.0
    %v56 = vadd.f32 %v54, 0.0
    %57 = vrot.lane.b32.xlu0 %v46, 127
    %v58 = vpop.permute.xlu0 %57
    %59 = vrot.lane.b32.xlu0 %v47, 127
    %v60 = vpop.permute.xlu0 %59
    %v61 = vadd.f32 %v55, %v58
    %v62 = vadd.f32 %v56, %v60
    %v63 = vrot.slane %v46, 7
    %v64 = vrot.slane %v47, 7
    %v65 = vlaneseq
    %v66 = vshrl.u32 %v65, 7
    %vm67 = vcmp.lt.s32.totalorder %v66, 1
    %v68 = vsel %vm67, %v63, %v64
    %v69 = vsel %vm67, %v64, %v63
    %v70 = vadd.f32 %v61, %v69
    %v71 = vadd.f32 %v62, %v68
    %v72 = vrot.slane %v46, 1
    %v73 = vrot.slane %v47, 1
    %vm74 = vcmp.lt.s32.totalorder %v66, 7
    %v75 = vsel %vm74, %v72, %v73
    %v76 = vsel %vm74, %v73, %v72
    %v77 = vadd.f32 %v70, %v75
    %v78 = vadd.f32 %v71, %v76
    %79 = vrot.lane.b32.xlu0 %v46, 2
    %v80 = vpop.permute.xlu0 %79
    %81 = vrot.lane.b32.xlu0 %v47, 2
    %v82 = vpop.permute.xlu0 %81
    %v83 = vadd.f32 %v77, %v80
    %v84 = vadd.f32 %v78, %v82
    %85 = vrot.lane.b32.xlu0 %v46, 126
    %v86 = vpop.permute.xlu0 %85
    %87 = vrot.lane.b32.xlu0 %v47, 126
    %v88 = vpop.permute.xlu0 %87
    %v89 = vadd.f32 %v83, %v86
    %v90 = vadd.f32 %v84, %v88
    %v91 = vrot.slane %v46, 6
    %v92 = vrot.slane %v47, 6
    %vm93 = vcmp.lt.s32.totalorder %v66, 2
    %v94 = vsel %vm93, %v91, %v92
    %v95 = vsel %vm93, %v92, %v91
    %v96 = vadd.f32 %v89, %v95
    %v97 = vadd.f32 %v90, %v94
    %v98 = vrot.slane %v46, 2
    %v99 = vrot.slane %v47, 2
    %vm100 = vcmp.lt.s32.totalorder %v66, 6
    %v101 = vsel %vm100, %v98, %v99
    %v102 = vsel %vm100, %v99, %v98
    %v103 = vadd.f32 %v96, %v101
    %v104 = vadd.f32 %v97, %v102
    %v105 = vmul.f32 %v46, 2.0
    %v106 = vmul.f32 %v47, 2.0
    %v107 = vmul.f32 %v105, %v103
    %v108 = vmul.f32 %v106, %v104
    %v109 = vsub.f32 %v49, %v107
    %v110 = vsub.f32 %v50, %v108
    %vm111 = vcmp.ge.f32.partialorder %v109, 0.0
    %vm112 = vcmp.ge.f32.partialorder %v110, 0.0
    %vm113 = vcmp.le.f32.partialorder %v109, 8.0
    %vm114 = vcmp.le.f32.partialorder %v110, 8.0
    %vm115 = vmand %vm111, %vm113
    %vm116 = vmand %vm112, %vm114
    %v117 = vsel %vm44, 16843009, 0
    %v118 = vsel %vm45, 16843009, 0
    %v119 = vunpack.c.0.s8 %v117
    %v120 = vunpack.c.0.s8 %v118
    %vm121 = vcmp.ne.s32.totalorder %v119, 0
    %vm122 = vcmp.ne.s32.totalorder %v120, 0
    %vm123 = vmand %vm115, %vm121
    %vm124 = vmand %vm116, %vm122
    %v125 = vsub.f32 0.0, %v46
    %v126 = vsub.f32 0.0, %v47
    %v127 = vsel %vm123, %v125, %v46
    %v128 = vsel %vm124, %v126, %v47
    %129 = vst [vmem:[#allocation7] sm:$0xff] %v127
    %130 = vst [vmem:[#allocation7 + $0x8] sm:$0xff] %v128
    %v131 = vsel %vm123, %v109, %v49
    %v132 = vsel %vm124, %v110, %v50
    %s133 = scalar_lea.vmem [#allocation7], 16
    %134 = vst [vmem:[%s133] sm:$0xff] %v131
    %135 = vst [vmem:[%s133 + $0x8] sm:$0xff] %v132
    %s136 = scalar_lea.vmem [#allocation2], 32
    %v137 = vld [vmem:[%s136] sm:$0xff]
    %v138 = vld [vmem:[%s136 + $0x8] sm:$0xff]
    %s139 = scalar_lea.vmem [#allocation2], 48
    %v140 = vld [vmem:[%s139] sm:$0xff]
    %v141 = vld [vmem:[%s139 + $0x8] sm:$0xff]
    %142 = vrot.lane.b32.xlu0 %v137, 1
    %v143 = vpop.permute.xlu0 %142
    %144 = vrot.lane.b32.xlu0 %v138, 1
    %v145 = vpop.permute.xlu0 %144
    %v146 = vadd.f32 %v143, 0.0
    %v147 = vadd.f32 %v145, 0.0
    %148 = vrot.lane.b32.xlu0 %v137, 127
    %v149 = vpop.permute.xlu0 %148
    %150 = vrot.lane.b32.xlu0 %v138, 127
    %v151 = vpop.permute.xlu0 %150
    %v152 = vadd.f32 %v146, %v149
    %v153 = vadd.f32 %v147, %v151
    %v154 = vrot.slane %v137, 7
    %v155 = vrot.slane %v138, 7
    %v156 = vsel %vm67, %v154, %v155
    %v157 = vsel %vm67, %v155, %v154
    %v158 = vadd.f32 %v152, %v157
    %v159 = vadd.f32 %v153, %v156
    %v160 = vrot.slane %v137, 1
    %v161 = vrot.slane %v138, 1
    %v162 = vsel %vm74, %v160, %v161
    %v163 = vsel %vm74, %v161, %v160
    %v164 = vadd.f32 %v158, %v162
    %v165 = vadd.f32 %v159, %v163
    %166 = vrot.lane.b32.xlu0 %v137, 2
    %v167 = vpop.permute.xlu0 %166
    %168 = vrot.lane.b32.xlu0 %v138, 2
    %v169 = vpop.permute.xlu0 %168
    %v170 = vadd.f32 %v164, %v167
    %v171 = vadd.f32 %v165, %v169
    %172 = vrot.lane.b32.xlu0 %v137, 126
    %v173 = vpop.permute.xlu0 %172
    %174 = vrot.lane.b32.xlu0 %v138, 126
    %v175 = vpop.permute.xlu0 %174
    %v176 = vadd.f32 %v170, %v173
    %v177 = vadd.f32 %v171, %v175
    %v178 = vrot.slane %v137, 6
    %v179 = vrot.slane %v138, 6
    %v180 = vsel %vm93, %v178, %v179
    %v181 = vsel %vm93, %v179, %v178
    %v182 = vadd.f32 %v176, %v181
    %v183 = vadd.f32 %v177, %v180
    %v184 = vrot.slane %v137, 2
    %v185 = vrot.slane %v138, 2
    %v186 = vsel %vm100, %v184, %v185
    %v187 = vsel %vm100, %v185, %v184
    %v188 = vadd.f32 %v182, %v186
    %v189 = vadd.f32 %v183, %v187
    %v190 = vmul.f32 %v137, 2.0
    %v191 = vmul.f32 %v138, 2.0
    %v192 = vmul.f32 %v190, %v188
    %v193 = vmul.f32 %v191, %v189
    %v194 = vsub.f32 %v140, %v192
    %v195 = vsub.f32 %v141, %v193
    %vm196 = vcmp.ge.f32.partialorder %v194, 0.0
    %vm197 = vcmp.ge.f32.partialorder %v195, 0.0
    %vm198 = vcmp.le.f32.partialorder %v194, 8.0
    %vm199 = vcmp.le.f32.partialorder %v195, 8.0
    %vm200 = vmand %vm196, %vm198
    %vm201 = vmand %vm197, %vm199
    %vm202 = vmand %vm200, %vm121
    %vm203 = vmand %vm201, %vm122
    %v204 = vsub.f32 0.0, %v137
    %v205 = vsub.f32 0.0, %v138
    %v206 = vsel %vm202, %v204, %v137
    %v207 = vsel %vm203, %v205, %v138
    %s208 = scalar_lea.vmem [#allocation7], 32
    %209 = vst [vmem:[%s208] sm:$0xff] %v206
    %210 = vst [vmem:[%s208 + $0x8] sm:$0xff] %v207
    %v211 = vsel %vm202, %v194, %v140
    %v212 = vsel %vm203, %v195, %v141
    %s213 = scalar_lea.vmem [#allocation7], 48
    %214 = vst [vmem:[%s213] sm:$0xff] %v211
    %215 = vst [vmem:[%s213 + $0x8] sm:$0xff] %v212
    // Predicated region
    $region18: #{tpu_custom_call.1} parent=1 // pred_check
      _
    $region19: #{tpu_custom_call.1} parent=1 // pred_check_branch
      %217 = sbr.rel (0) target = $region21
    $region20: #{tpu_custom_call.1} parent=1 // pred_region
      %s219 = ssub.s32 1024, 1024
      %220 = vsyncadd [#allocation4], %s219
      %s221 = sshll.u32 [#allocation7], 4
      %s222 = int_to_ptr.vmem [resolvable:$true] %s221
      %227 = dma.vmem_to_hbm [thread:$0]  %s222, 1024, %s2, [#allocation4], 128, 128, 8
    $region21: #{tpu_custom_call.1} parent=1 // pred_fallthru
      _
    // Predicated region
    $region22: #{tpu_custom_call.1} parent=1 // pred_check
      _
    $region23: #{tpu_custom_call.1} parent=1 // pred_check_branch
      %229 = sbr.rel (0) target = $region25
    $region24: #{tpu_custom_call.1} parent=1 // pred_region
      %230 = dma.done [#allocation4], 1024
    $region25: #{tpu_custom_call.1} parent=1 // pred_fallthru
      _
    %231 = vsyncpa [#allocation3], 1
    %232 = vsyncpa [#allocation6], 1
    %233 = vsyncpa [#allocation4], 1

</llo_original>
